<compile_context>
chip_gen: v6e
topology: v6e:2x2x1
jax: 0.10.0
libtpu: 0.0.40
codegen_flags: <defaults>
</compile_context>

<pallas_src>
import functools

import jax
import jax.numpy as jnp
from jax.experimental import pallas as pl
from jax.experimental.pallas import tpu as pltpu

_VMEM_LIMIT = 48 * 1024 * 1024  # explicit scoped-VMEM limit (safe on v5e/v6e/v7x)


def _round_up(v, m):
    return (v + m - 1) // m * m


# ---------------------------------------------------------------------------
# Pallas kernels
# ---------------------------------------------------------------------------

def _linear_kernel(x_ref, w_ref, b_ref, o_ref, *, relu):
    y = jnp.dot(x_ref[...], w_ref[...], preferred_element_type=jnp.float32)
    y = y + b_ref[...]
    if relu:
        y = jnp.maximum(y, 0.0)
    o_ref[...] = y.astype(o_ref.dtype)


def linear_rows(x, w, b, *, relu, tm):
    """Row-tiled Linear (+optional ReLU).  x:(M_pad,K_pad) bf16, w:(K_pad,N_pad) bf16."""
    m_pad, k_pad = x.shape
    n_out = w.shape[1]
    grid_m = m_pad // tm
    return pl.pallas_call(
        functools.partial(_linear_kernel, relu=relu),
        grid=(grid_m,),
        in_specs=[
            pl.BlockSpec((tm, k_pad), lambda i: (i, 0)),
            pl.BlockSpec((k_pad, n_out), lambda i: (0, 0)),
            pl.BlockSpec((1, n_out), lambda i: (0, 0)),
        ],
        out_specs=pl.BlockSpec((tm, n_out), lambda i: (i, 0)),
        out_shape=jax.ShapeDtypeStruct((m_pad, n_out), jnp.bfloat16),
        compiler_params=pltpu.CompilerParams(
            dimension_semantics=("parallel",),
            vmem_limit_bytes=_VMEM_LIMIT),
    )(x, w, b)


def _gin_conv_kernel(a_ref, x_ref, w1_ref, b1_ref, w2_ref, b2_ref,
                     o_ref, acc_ref):
    # Aggregation: acc += A_hat[i, k-tile] @ x[k-tile, :]   (A_hat = A + (1+eps)I)
    @pl.when(pl.program_id(1) == 0)
    def _():
        acc_ref[...] = jnp.zeros_like(acc_ref)

    acc_ref[...] += jnp.dot(a_ref[...], x_ref[...],
                            preferred_element_type=jnp.float32)

    # Epilogue on the finalized aggregation: inner MLP + outer ReLU, fused in VMEM.
    @pl.when(pl.program_id(1) == pl.num_programs(1) - 1)
    def _():
        h = jnp.dot(acc_ref[...].astype(jnp.bfloat16), w1_ref[...],
                    preferred_element_type=jnp.float32) + b1_ref[...]
        h = jnp.maximum(h, 0.0)
        y = jnp.dot(h.astype(jnp.bfloat16), w2_ref[...],
                    preferred_element_type=jnp.float32) + b2_ref[...]
        y = jnp.maximum(y, 0.0)          # outer F.relu fused here
        o_ref[...] = y.astype(o_ref.dtype)


def gin_conv_layer(a, x, w1, b1, w2, b2, *, tm, tk):
    """One fused GINConv layer: relu(W2 @ relu(W1 @ (A_hat @ x) + b1) + b2)."""
    n_pad = a.shape[0]
    f_pad = x.shape[1]
    grid_m = n_pad // tm
    grid_k = n_pad // tk
    return pl.pallas_call(
        _gin_conv_kernel,
        grid=(grid_m, grid_k),
        in_specs=[
            pl.BlockSpec((tm, tk), lambda i, k: (i, k)),
            pl.BlockSpec((tk, f_pad), lambda i, k: (k, 0)),
            pl.BlockSpec((f_pad, f_pad), lambda i, k: (0, 0)),
            pl.BlockSpec((1, f_pad), lambda i, k: (0, 0)),
            pl.BlockSpec((f_pad, f_pad), lambda i, k: (0, 0)),
            pl.BlockSpec((1, f_pad), lambda i, k: (0, 0)),
        ],
        out_specs=pl.BlockSpec((tm, f_pad), lambda i, k: (i, 0)),
        out_shape=jax.ShapeDtypeStruct((n_pad, f_pad), jnp.bfloat16),
        scratch_shapes=[pltpu.VMEM((tm, f_pad), jnp.float32)],
        compiler_params=pltpu.CompilerParams(
            dimension_semantics=("parallel", "arbitrary"),
            vmem_limit_bytes=_VMEM_LIMIT),
    )(a, x, w1, b1, w2, b2)


def _tail_kernel(pool_ref, x_ref, wp_ref, bp_ref, wr_ref, br_ref,
                 logp_ref, x1_ref, *, nclass):
    # global_add_pool as P @ x
    x1 = jnp.dot(pool_ref[...], x_ref[...], preferred_element_type=jnp.float32)
    x1_ref[...] = x1.astype(x1_ref.dtype)
    # post: Linear + ReLU   (dropout identity, eval mode)
    h = jnp.dot(x1.astype(jnp.bfloat16), wp_ref[...],
                preferred_element_type=jnp.float32) + bp_ref[...]
    h = jnp.maximum(h, 0.0)
    # readout: Linear
    logits = jnp.dot(h.astype(jnp.bfloat16), wr_ref[...],
                     preferred_element_type=jnp.float32) + br_ref[...]
    # mask padded class columns, then stabilized log_softmax
    col = jax.lax.broadcasted_iota(jnp.int32, logits.shape, 1)
    logits = jnp.where(col < nclass, logits, jnp.float32(-1e30))
    m = jnp.max(logits, axis=1, keepdims=True)
    s = logits - m
    lse = jnp.log(jnp.sum(jnp.exp(s), axis=1, keepdims=True))
    logp_ref[...] = (s - lse).astype(logp_ref.dtype)


def pooled_head(pool, x2, wp, bp, wr, br, *, nclass):
    g_pad, n_pad = pool.shape
    f_pad = x2.shape[1]
    c_pad = wr.shape[1]
    return pl.pallas_call(
        functools.partial(_tail_kernel, nclass=nclass),
        grid=(1,),
        in_specs=[
            pl.BlockSpec((g_pad, n_pad), lambda i: (0, 0)),
            pl.BlockSpec((n_pad, f_pad), lambda i: (0, 0)),
            pl.BlockSpec((f_pad, f_pad), lambda i: (0, 0)),
            pl.BlockSpec((1, f_pad), lambda i: (0, 0)),
            pl.BlockSpec((f_pad, c_pad), lambda i: (0, 0)),
            pl.BlockSpec((1, c_pad), lambda i: (0, 0)),
        ],
        out_specs=[
            pl.BlockSpec((g_pad, c_pad), lambda i: (0, 0)),
            pl.BlockSpec((g_pad, f_pad), lambda i: (0, 0)),
        ],
        out_shape=(jax.ShapeDtypeStruct((g_pad, c_pad), jnp.float32),
                   jax.ShapeDtypeStruct((g_pad, f_pad), jnp.float32)),
        compiler_params=pltpu.CompilerParams(
            dimension_semantics=("arbitrary",),
            vmem_limit_bytes=_VMEM_LIMIT),
    )(pool, x2, wp, bp, wr, br)


# ---------------------------------------------------------------------------
# Parameter init (mirrors torch.nn.Linear default init shapes)
# ---------------------------------------------------------------------------

def _init_linear(key, fan_in, fan_out):
    k1, k2 = jax.random.split(key)
    bound = 1.0 / (fan_in ** 0.5)
    w = jax.random.uniform(k1, (fan_in, fan_out), minval=-bound, maxval=bound,
                           dtype=jnp.float32)
    b = jax.random.uniform(k2, (fan_out,), minval=-bound, maxval=bound,
                           dtype=jnp.float32)
    return w, b


def init_params(key, nfeat, nhid, nclass, nlayer):
    keys = jax.random.split(key, 3 + 2 * nlayer)
    params = {"pre": _init_linear(keys[0], nfeat, nhid), "convs": []}
    for l in range(nlayer):
        lin1 = _init_linear(keys[1 + 2 * l], nhid, nhid)
        lin2 = _init_linear(keys[2 + 2 * l], nhid, nhid)
        params["convs"].append((lin1, lin2))
    params["post"] = _init_linear(keys[1 + 2 * nlayer], nhid, nhid)
    params["readout"] = _init_linear(keys[2 + 2 * nlayer], nhid, nclass)
    return params


# ---------------------------------------------------------------------------
# Forward pass (matches GIN.forward semantics, eval mode)
# ---------------------------------------------------------------------------

def _pad_w(w, rows, cols):
    return jnp.zeros((rows, cols), jnp.bfloat16).at[
        :w.shape[0], :w.shape[1]].set(w.astype(jnp.bfloat16))


def _pad_b(b, cols):
    return jnp.zeros((1, cols), jnp.float32).at[0, :b.shape[0]].set(b)


def gin_forward(params, x, edge_index, batch, num_graphs, eps=0.0):
    n, nfeat = x.shape
    nhid = params["pre"][0].shape[1]
    nclass = params["readout"][0].shape[1]

    # Tile / padding choices: lane dims padded to 128, node rows to the row tile.
    tm = 128 if n > 128 else _round_up(n, 8)
    n_pad = _round_up(n, tm)
    k_pad = _round_up(max(nfeat, 128), 128)
    f_pad = _round_up(max(nhid, 128), 128)
    c_pad = _round_up(max(nclass, 128), 128)
    g_pad = _round_up(max(num_graphs, 8), 8)

    # --- setup glue (scatter / one-hot; not a Pallas hot path) ---------------
    # A_hat[dst, src] = edge multiplicity, with (1+eps)*I folded in.
    a = jnp.zeros((n_pad, n_pad), jnp.float32)
    a = a.at[edge_index[1], edge_index[0]].add(1.0)
    a = a.at[jnp.arange(n), jnp.arange(n)].add(1.0 + eps)
    a = a.astype(jnp.bfloat16)                       # small int counts: exact in bf16

    # Pool matrix P[g, i] = 1 if node i belongs to graph g.
    pool = jnp.zeros((g_pad, n_pad), jnp.float32)
    pool = pool.at[batch, jnp.arange(n)].set(1.0).astype(jnp.bfloat16)

    x_p = jnp.zeros((n_pad, k_pad), jnp.bfloat16).at[:n, :nfeat].set(
        x.astype(jnp.bfloat16))

    # --- x = self.pre(x) ------------------------------------------------------
    w_pre, b_pre = params["pre"]
    h = linear_rows(x_p, _pad_w(w_pre, k_pad, f_pad), _pad_b(b_pre, f_pad),
                    relu=False, tm=tm)

    # --- GINConv layers (fused agg + MLP + outer ReLU per layer) -------------
    # TODO(synk): training-mode dropout (F.dropout) not implemented; eval-mode identity.
    for (w1, b1), (w2, b2) in params["convs"]:
        h = gin_conv_layer(a, h,
                           _pad_w(w1, f_pad, f_pad), _pad_b(b1, f_pad),
                           _pad_w(w2, f_pad, f_pad), _pad_b(b2, f_pad),
                           tm=tm, tk=tm)

    # --- fused tail: pool -> post -> readout -> log_softmax ------------------
    wp, bp = params["post"]
    wr, br = params["readout"]
    logp_p, x1_p = pooled_head(pool, h,
                               _pad_w(wp, f_pad, f_pad), _pad_b(bp, f_pad),
                               _pad_w(wr, f_pad, c_pad), _pad_b(br, c_pad),
                               nclass=nclass)

    logp = logp_p[:num_graphs, :nclass]
    x1 = x1_p[:num_graphs, :nhid]
    x2 = h[:n, :nhid].astype(jnp.float32)
    return logp, x1, x2


if __name__ == "__main__":
    key = jax.random.PRNGKey(0)
    nfeat, nhid, nclass, nlayer, dropout = 8, 32, 4, 2, 0.5
    num_nodes, num_edges, num_graphs = 16, 40, 2

    k_x, k_e, k_p = jax.random.split(key, 3)
    x = jax.random.normal(k_x, (num_nodes, nfeat), dtype=jnp.float32)
    edge_index = jax.random.randint(k_e, (2, num_edges), 0, num_nodes,
                                    dtype=jnp.int32)
    batch = jnp.concatenate([
        jnp.zeros(num_nodes // 2, dtype=jnp.int32),
        jnp.ones(num_nodes - num_nodes // 2, dtype=jnp.int32),
    ])

    params = init_params(k_p, nfeat, nhid, nclass, nlayer)
    logp, x1, x2 = gin_forward(params, x, edge_index, batch, num_graphs)
    jax.block_until_ready((logp, x1, x2))

    assert logp.shape == (num_graphs, nclass)
    assert x1.shape == (num_graphs, nhid)
    assert x2.shape == (num_nodes, nhid)
    print("KERNEL_OK")
</pallas_src>

<mosaic_0001>
module attributes {stable_mosaic.version = 11 : i64} {
  func.func @_linear_kernel(%arg0: i32, %arg1: memref<16x128xbf16, #tpu.memory_space<vmem>>, %arg2: memref<128x128xbf16, #tpu.memory_space<vmem>>, %arg3: memref<1x128xf32, #tpu.memory_space<vmem>>, %arg4: memref<16x128xbf16, #tpu.memory_space<vmem>>) attributes {dimension_semantics = [#tpu.dimension_semantics<parallel>], iteration_bounds = array<i64: 1>, scalar_prefetch = 0 : i64, scratch_operands = 0 : i64, tpu.core_type = #tpu.core_type<tc>, window_params = [{transform_indices = @transform_0, window_bounds = array<i64: 16, 128>}, {pipeline_mode = #tpu.pipeline_mode<synchronous>, transform_indices = @transform_1, window_bounds = array<i64: 128, 128>}, {pipeline_mode = #tpu.pipeline_mode<synchronous>, transform_indices = @transform_2, window_bounds = array<i64: 1, 128>}, {transform_indices = @transform_3, window_bounds = array<i64: 16, 128>}]} {
    %c0 = arith.constant 0 : index
    %c0_0 = arith.constant 0 : index
    %0 = vector.load %arg1[%c0, %c0_0] : memref<16x128xbf16, #tpu.memory_space<vmem>>, vector<16x128xbf16>
    %c0_1 = arith.constant 0 : index
    %c0_2 = arith.constant 0 : index
    %1 = vector.load %arg2[%c0_1, %c0_2] : memref<128x128xbf16, #tpu.memory_space<vmem>>, vector<128x128xbf16>
    %cst = arith.constant dense<0.000000e+00> : vector<16x128xf32>
    %2 = tpu.matmul %0, %1, %cst {dimension_numbers = #tpu.dot_dimension_numbers<[1], [0], [0], [1], [0, 0, 1, 1], [], []>} : vector<16x128xbf16>, vector<128x128xbf16>, vector<16x128xf32> -> vector<16x128xf32>
    %c0_3 = arith.constant 0 : index
    %c0_4 = arith.constant 0 : index
    %3 = vector.load %arg3[%c0_3, %c0_4] : memref<1x128xf32, #tpu.memory_space<vmem>>, vector<1x128xf32>
    %4 = vector.broadcast %3 : vector<1x128xf32> to vector<16x128xf32>
    %5 = arith.addf %2, %4 : vector<16x128xf32>
    %6 = arith.truncf %5 : vector<16x128xf32> to vector<16x128xbf16>
    %c0_5 = arith.constant 0 : index
    %c0_6 = arith.constant 0 : index
    %7 = vector.load %arg4[%c0_5, %c0_6] : memref<16x128xbf16, #tpu.memory_space<vmem>>, vector<16x128xbf16>
    tpu.vector_store %arg4[%c0_5, %c0_6], %6 {strides = array<i32>} : memref<16x128xbf16, #tpu.memory_space<vmem>>, vector<16x128xbf16>,
    return
  }
  func.func @transform_0(%arg0: i32) -> (i32, i32) {
    %c0_i32 = arith.constant 0 : i32
    %c0_i32_0 = arith.constant 0 : i32
    return %arg0, %c0_i32 : i32, i32
  }
  func.func @transform_1(%arg0: i32) -> (i32, i32) {
    %c0_i32 = arith.constant 0 : i32
    %c0_i32_0 = arith.constant 0 : i32
    %c0_i32_1 = arith.constant 0 : i32
    return %c0_i32, %c0_i32_0 : i32, i32
  }
  func.func @transform_2(%arg0: i32) -> (i32, i32) {
    %c0_i32 = arith.constant 0 : i32
    %c0_i32_0 = arith.constant 0 : i32
    %c0_i32_1 = arith.constant 0 : i32
    return %c0_i32, %c0_i32_0 : i32, i32
  }
  func.func @transform_3(%arg0: i32) -> (i32, i32) {
    %c0_i32 = arith.constant 0 : i32
    %c0_i32_0 = arith.constant 0 : i32
    return %arg0, %c0_i32 : i32, i32
  }
}

</mosaic_0001>

<llo_original>
// kernel: tpu_custom_call.1
$region0: #{tpu_custom_call.1}
  #allocation0 [shape = 'u32[]', space=smem, size = 0x4, offset = 0x4, fixed_abs, tag = 'smem constant byte address 0x4 - core index']
  #allocation1 [shape = 'u32[144,128]{1,0:T(1,128)}', space=vmem, size = 0x12000, scoped, tag = 'internal scratch']
  %s0 = inlined_call_operand.hbm [shape: bf16[16,128], index: 0, kind: input, shape index: {}]
  %s1 = inlined_call_operand.hbm [shape: bf16[128,128], index: 1, kind: input, shape index: {}]
  %s2 = inlined_call_operand.vmem [shape: f32[1,128], index: 2, kind: input, shape index: {}]
  %s3 = inlined_call_operand.hbm [shape: bf16[16,128], index: 3, kind: output, shape index: {}]
  %s4 = sld [smem:[#allocation0]]
  $region30: #{tpu_custom_call.1} parent=0
    _
  %s6 = ssub.s32 1, %s4
  %s7 = scalar_select 0, %s6, %s4
  $region1: #{tpu_custom_call.1} parent=0
    #allocation2 [shape = 'u8[4096]{0}', space=vmem, size = 0x1000, scoped, tag = 'input window, operand 0, single buffered']
    #allocation3 [shape = 's32[1]{0}', space=sflag, size = 0x4, scoped, tag = 'scoped memory for tpu_custom_call.1']
    #allocation4 [shape = 's32[1]{0}', space=sflag, size = 0x4, scoped, tag = 'scoped memory for tpu_custom_call.1']
    #allocation5 [shape = 'u8[32768]{0}', space=vmem, size = 0x8000, scoped, tag = 'input window, operand 1, single buffered']
    #allocation6 [shape = 's32[1]{0}', space=sflag, size = 0x4, scoped, tag = 'scoped memory for tpu_custom_call.1']
    #allocation7 [shape = 'u8[4096]{0}', space=vmem, size = 0x1000, scoped, tag = 'output window, operand 0, single buffered']
    %8 = vsyncpa [#allocation3], 0
    %9 = vsyncpa [#allocation6], 0
    %10 = vsyncpa [#allocation4], 0
    // Predicated region
    $region2: #{tpu_custom_call.1} parent=1 // pred_check
      _
    $region3: #{tpu_custom_call.1} parent=1 // pred_check_branch
      %12 = sbr.rel (0) target = $region5
    $region4: #{tpu_custom_call.1} parent=1 // pred_region
      %s14 = ssub.s32 128, 128
      %15 = vsyncadd [#allocation3], %s14
      %s16 = sshll.u32 [#allocation2], 4
      %s17 = int_to_ptr.vmem [resolvable:$true] %s16
      %22 = dma.hbm_to_vmem [thread:$0]  %s0, 128, %s17, [#allocation3], 64, 64, 4
    $region5: #{tpu_custom_call.1} parent=1 // pred_fallthru
      _
    // Predicated region
    $region6: #{tpu_custom_call.1} parent=1 // pred_check
      _
    $region7: #{tpu_custom_call.1} parent=1 // pred_check_branch
      %24 = sbr.rel (0) target = $region9
    $region8: #{tpu_custom_call.1} parent=1 // pred_region
      %s26 = ssub.s32 1024, 1024
      %27 = vsyncadd [#allocation6], %s26
      %s28 = sshll.u32 [#allocation5], 4
      %s29 = int_to_ptr.vmem [resolvable:$true] %s28
      %34 = dma.hbm_to_vmem [thread:$0]  %s1, 1024, %s29, [#allocation6], 64, 64, 4
    $region9: #{tpu_custom_call.1} parent=1 // pred_fallthru
      _
    // Predicated region
    $region10: #{tpu_custom_call.1} parent=1 // pred_check
      _
    $region11: #{tpu_custom_call.1} parent=1 // pred_check_branch
      %36 = sbr.rel (0) target = $region13
    $region12: #{tpu_custom_call.1} parent=1 // pred_region
      _
    $region13: #{tpu_custom_call.1} parent=1 // pred_fallthru
      _
    // Predicated region
    $region14: #{tpu_custom_call.1} parent=1 // pred_check
      _
    $region15: #{tpu_custom_call.1} parent=1 // pred_check_branch
      %38 = sbr.rel (0) target = $region17
    $region16: #{tpu_custom_call.1} parent=1 // pred_region
      %39 = dma.done [#allocation3], 128
    $region17: #{tpu_custom_call.1} parent=1 // pred_fallthru
      _
    // Predicated region
    $region18: #{tpu_custom_call.1} parent=1 // pred_check
      _
    $region19: #{tpu_custom_call.1} parent=1 // pred_check_branch
      %41 = sbr.rel (0) target = $region21
    $region20: #{tpu_custom_call.1} parent=1 // pred_region
      %42 = dma.done [#allocation6], 1024
    $region21: #{tpu_custom_call.1} parent=1 // pred_fallthru
      _
    %v44 = vld [vmem:[#allocation2] sm:$0xf]
    %v45 = vld [vmem:[#allocation2 + $0x4] sm:$0xf]
    %v46 = vld [vmem:[#allocation5] sm:$0xf]
    %v47 = vld [vmem:[#allocation5 + $0x4] sm:$0xf]
    %v48 = vld [vmem:[#allocation5 + $0x8] sm:$0xf]
    %v49 = vld [vmem:[#allocation5 + $0xc] sm:$0xf]
    %v50 = vld [vmem:[#allocation5 + $0x10] sm:$0xf]
    %v51 = vld [vmem:[#allocation5 + $0x14] sm:$0xf]
    %v52 = vld [vmem:[#allocation5 + $0x18] sm:$0xf]
    %v53 = vld [vmem:[#allocation5 + $0x1c] sm:$0xf]
    %v54 = vld [vmem:[#allocation5 + $0x20] sm:$0xf]
    %v55 = vld [vmem:[#allocation5 + $0x24] sm:$0xf]
    %v56 = vld [vmem:[#allocation5 + $0x28] sm:$0xf]
    %v57 = vld [vmem:[#allocation5 + $0x2c] sm:$0xf]
    %v58 = vld [vmem:[#allocation5 + $0x30] sm:$0xf]
    %v59 = vld [vmem:[#allocation5 + $0x34] sm:$0xf]
    %v60 = vld [vmem:[#allocation5 + $0x38] sm:$0xf]
    %v61 = vld [vmem:[#allocation5 + $0x3c] sm:$0xf]
    %v62 = vld [vmem:[%s2] sm:$0x1]
    %v64 = vlaneseq
    %v65 = vshrl.u32 %v64, 7
    %v66 = vsub.s32 0, %v65
    %v67 = vrot.slane %v62, %v66
    %v71 = vunpack.c.l.b16 %v44
    %v72 = vunpack.c.l.b16 %v45
    %v73 = vpack.c.b16 %v72, %v71
    %v91 = vunpack.c.l.b16 %v46
    %v92 = vunpack.c.l.b16 %v47
    %v93 = vunpack.c.l.b16 %v48
    %v94 = vunpack.c.l.b16 %v49
    %v95 = vunpack.c.l.b16 %v50
    %v96 = vunpack.c.l.b16 %v51
    %v97 = vunpack.c.l.b16 %v52
    %v98 = vunpack.c.l.b16 %v53
    %v99 = vunpack.c.l.b16 %v54
    %v100 = vunpack.c.l.b16 %v55
    %v101 = vunpack.c.l.b16 %v56
    %v102 = vunpack.c.l.b16 %v57
    %v103 = vunpack.c.l.b16 %v58
    %v104 = vunpack.c.l.b16 %v59
    %v105 = vunpack.c.l.b16 %v60
    %v106 = vunpack.c.l.b16 %v61
    %v107 = vpack.c.b16 %v92, %v91
    %v108 = vpack.c.b16 %v94, %v93
    %v109 = vpack.c.b16 %v96, %v95
    %v110 = vpack.c.b16 %v98, %v97
    %v111 = vpack.c.b16 %v100, %v99
    %v112 = vpack.c.b16 %v102, %v101
    %v113 = vpack.c.b16 %v104, %v103
    %v114 = vpack.c.b16 %v106, %v105
    %123 = vmatprep.subr.bf16.mxu0 0
    %124 = vmatpush1.bf16.msra.mxu0 %v114
    %125 = vmatprep.subr.bf16.mxu0 0
    %126 = vmatpush1.bf16.msra.mxu0 %v113
    %127 = vmatprep.subr.bf16.mxu0 0
    %128 = vmatpush1.bf16.msra.mxu0 %v112
    %129 = vmatprep.subr.bf16.mxu0 0
    %130 = vmatpush1.bf16.msra.mxu0 %v111
    %131 = vmatprep.subr.bf16.mxu0 0
    %132 = vmatpush1.bf16.msra.mxu0 %v110
    %133 = vmatprep.subr.bf16.mxu0 0
    %134 = vmatpush1.bf16.msra.mxu0 %v109
    %135 = vmatprep.subr.bf16.mxu0 0
    %136 = vmatpush1.bf16.msra.mxu0 %v108
    %137 = vmatprep.subr.bf16.mxu0 0
    %138 = vmatpush1.bf16.msra.mxu0 %v107
    %139 = vmatprep.subr.bf16.mxu0 0
    %140 = vmatpush2.bf16.msra.mxu0 0
    %141 = vmatprep.subr.bf16.mxu0 0
    %142 = vmatpush2.bf16.msra.mxu0 0
    %143 = vmatprep.subr.bf16.mxu0 0
    %144 = vmatpush2.bf16.msra.mxu0 0
    %145 = vmatprep.subr.bf16.mxu0 0
    %146 = vmatpush2.bf16.msra.mxu0 0
    %147 = vmatprep.subr.bf16.mxu0 0
    %148 = vmatpush2.bf16.msra.mxu0 0
    %149 = vmatprep.subr.bf16.mxu0 0
    %150 = vmatpush2.bf16.msra.mxu0 0
    %151 = vmatprep.subr.bf16.mxu0 0
    %152 = vmatpush2.bf16.msra.mxu0 0
    %153 = vmatprep.subr.bf16.mxu0 0
    %154 = vmatpush2.bf16.msra.mxu0 0
    %155 = vmatprep.mubr.bf16.mxu0 0
    %156 = vmatmul.mubr.bf16.gmra.mxu0 %v73
    %v157 = vpop.f32.mrf.mxu0
    %v158 = vadd.f32 %v67, %v157
    %v159 = vpop.f32.mrf.mxu0
    %v160 = vpop.f32.mrf.mxu0
    %v161 = vadd.f32 %v67, %v160
    %v162 = vpop.f32.mrf.mxu0
    %163 = vdwg.mxu0
    %v164 = vpack.c.bf16 %v161, %v158
    %v166 = vunpack.c.l.b16 %v164
    %v167 = vunpack.c.h.b16 %v164
    %v168 = vpack.c.b16 %v166, %v166
    %v169 = vpack.c.b16 %v167, %v167
    %172 = vst [vmem:[#allocation7] sm:$0xf] %v168
    %173 = vst [vmem:[#allocation7 + $0x4] sm:$0xf] %v169
    // Predicated region
    $region22: #{tpu_custom_call.1} parent=1 // pred_check
      _
    $region23: #{tpu_custom_call.1} parent=1 // pred_check_branch
      %175 = sbr.rel (0) target = $region25
    $region24: #{tpu_custom_call.1} parent=1 // pred_region
      %s177 = ssub.s32 128, 128
      %178 = vsyncadd [#allocation4], %s177
      %s179 = sshll.u32 [#allocation7], 4
      %s180 = int_to_ptr.vmem [resolvable:$true] %s179
      %185 = dma.vmem_to_hbm [thread:$0]  %s180, 128, %s3, [#allocation4], 64, 64, 4
    $region25: #{tpu_custom_call.1} parent=1 // pred_fallthru
      _
    // Predicated region
    $region26: #{tpu_custom_call.1} parent=1 // pred_check
      _
    $region27: #{tpu_custom_call.1} parent=1 // pred_check_branch
      %187 = sbr.rel (0) target = $region29
    $region28: #{tpu_custom_call.1} parent=1 // pred_region
      %188 = dma.done [#allocation4], 128
    $region29: #{tpu_custom_call.1} parent=1 // pred_fallthru
      _
    %189 = vsyncpa [#allocation3], 1
    %190 = vsyncpa [#allocation6], 1
    %191 = vsyncpa [#allocation4], 1

</llo_original>
